<compile_context>
chip_gen: v7x
topology: tpu7x:2x2x1
jax: 0.10.0
libtpu: 0.0.40
codegen_flags: <defaults>
</compile_context>

<pallas_src>
import jax
import jax.numpy as jnp
from jax import lax
from jax.experimental import pallas as pl
from jax.experimental.pallas import tpu as pltpu

EPS = 1e-5  # nn.BatchNorm2d default


def _band_weights(w_kh, width):
    """w_kh: (3, Cin, Cout) kw-taps of one kernel row -> banded (W*Cin, W*Cout)."""
    return sum(jnp.kron(jnp.eye(width, k=1 - kw, dtype=w_kh.dtype), w_kh[kw])
               for kw in range(3))


def basic_block_forward(x_nchw, params):
    """x_nchw: (N, Cin, H, W) f32 -> (N, Cout, H, W) f32 (stride=1 block)."""
    w1, g1, b1, w2, g2, b2, wsc, gsc, bsc = params
    N, Cin, H, W = x_nchw.shape
    Cout = w1.shape[-1]
    NH, WCi, WCo, M = N * H, W * Cin, W * Cout, N * H * W
    inv_m = 1.0 / M

    # ---- wrapper-side layout & weight plumbing (no compute hoisted) ---------
    # activations: NCHW -> lane-dense (N*H, W*Cin); no H padding (halo is built
    # in-kernel with rolls + boundary masks).
    x_flat = jnp.transpose(x_nchw, (0, 2, 3, 1)).reshape(NH, WCi)

    # banded-Toeplitz weights, one band per kh row tap (kw taps live inside the
    # band); stacked along K so each conv is a single MXU matmul.
    t1 = [_band_weights(w1[kh], W) for kh in range(3)]            # (WCi, WCo)
    t2 = [_band_weights(w2[kh], W) for kh in range(3)]            # (WCo, WCo)
    tsc = jnp.kron(jnp.eye(W, dtype=wsc.dtype), wsc)              # (WCi, WCo)

    zblk = jnp.zeros((WCi, WCo), jnp.float32)
    rhs1 = jnp.concatenate([                                       # (3*WCi, 2*WCo)
        jnp.concatenate([t1[0], zblk], axis=1),
        jnp.concatenate([t1[1], tsc], axis=1),   # shortcut only sees x_mid
        jnp.concatenate([t1[2], zblk], axis=1),
    ], axis=0)
    rhs2 = jnp.concatenate(t2, axis=0)                             # (3*WCo, WCo)

    # single BN-parameter operand: [gmat (WCo,WCo) ; tiled affine rows (8,WCo)]
    lane = jnp.arange(WCo)
    gmat = (lane[:, None] % Cout == lane[None, :] % Cout).astype(jnp.float32)
    tile_l = lambda v: jnp.tile(v.reshape(1, Cout), (1, W))
    aff = jnp.concatenate(
        [tile_l(v) for v in (g1, b1, g2, b2, gsc, bsc)]
        + [jnp.zeros((2, WCo), jnp.float32)], axis=0)              # (8, WCo)
    bnp = jnp.concatenate([gmat, aff], axis=0)                     # (WCo+8, WCo)

    def kernel(x_ref, rhs1_ref, rhs2_ref, bnp_ref, out_ref):
        gm = bnp_ref[0:WCo, :]                                     # (WCo, WCo)
        aff_blk = bnp_ref[WCo:WCo + 8, :]                          # (8, WCo)
        g1l, b1l = aff_blk[0:1, :], aff_blk[1:2, :]
        g2l, b2l = aff_blk[2:3, :], aff_blk[3:4, :]
        gscl, bscl = aff_blk[4:5, :], aff_blk[5:6, :]

        # per-batch boundary-row masks (plain compares/ands: N is a small
        # static constant, avoids vector integer-mod lowering).
        row = lax.broadcasted_iota(jnp.int32, (NH, 1), 0)
        not_top = row != 0
        not_bot = row != (H - 1)
        for n in range(1, N):
            not_top = jnp.logical_and(not_top, row != n * H)
            not_bot = jnp.logical_and(not_bot, row != n * H + H - 1)

        def halo(v):
            # sublane rolls on the XLU; roll wraps across batch boundaries in
            # the flattened (N*H) row axis, so zero those rows explicitly.
            up = jnp.where(not_top, pltpu.roll(v, shift=1, axis=0), 0.0)
            dn = jnp.where(not_bot, pltpu.roll(v, shift=v.shape[0] - 1, axis=0), 0.0)
            return up, dn

        def fold_stats(slabs):
            # one (k, WCo) x (WCo, WCo) matmul folds per-channel batch stats
            # and re-broadcasts them across the W lane-groups for k/2 BN layers
            st = jnp.concatenate(
                [jnp.concatenate([jnp.sum(y, axis=0, keepdims=True),
                                  jnp.sum(y * y, axis=0, keepdims=True)], axis=0)
                 for y in slabs], axis=0)
            return jnp.dot(st, gm, preferred_element_type=jnp.float32) * inv_m

        def bn_apply(y, mean, ex2, gamma_l, beta_l):
            a = lax.rsqrt(ex2 - mean * mean + EPS) * gamma_l
            return y * a + (beta_l - mean * a)

        # ---- conv1 (+ fused 1x1 shortcut): one K-concat MXU matmul ----------
        x = x_ref[...]
        x_top, x_bot = halo(x)
        y = jnp.dot(jnp.concatenate([x_top, x, x_bot], axis=1), rhs1_ref[...],
                    preferred_element_type=jnp.float32)            # (NH, 2*WCo)
        y1, y_sc = y[:, :WCo], y[:, WCo:]

        # ---- bn1 + relu -----------------------------------------------------
        f1 = fold_stats([y1])                                      # (2, WCo)
        out1 = jnp.maximum(bn_apply(y1, f1[0:1], f1[1:2], g1l, b1l), 0.0)

        # ---- conv2: one K-concat MXU matmul (roll-based halo, no scratch) ---
        o_top, o_bot = halo(out1)
        y2 = jnp.dot(jnp.concatenate([o_top, out1, o_bot], axis=1), rhs2_ref[...],
                     preferred_element_type=jnp.float32)           # (NH, WCo)

        # ---- bn2 + shortcut-bn (shared stats fold) + residual + relu --------
        f = fold_stats([y2, y_sc])                                 # (4, WCo)
        out2 = bn_apply(y2, f[0:1], f[1:2], g2l, b2l)
        sc = bn_apply(y_sc, f[2:3], f[3:4], gscl, bscl)
        out_ref[...] = jnp.maximum(out2 + sc, 0.0)     # lane-dense (NH, WCo)

    vmem = pl.BlockSpec(memory_space=pltpu.MemorySpace.VMEM)
    out_flat = pl.pallas_call(
        kernel,
        out_shape=jax.ShapeDtypeStruct((NH, WCo), jnp.float32),
        in_specs=[vmem] * 4,
        out_specs=vmem,
    )(x_flat, rhs1, rhs2, bnp)

    # (N*H, W*Cout) -> NHWC -> NCHW (pure layout plumbing)
    return jnp.transpose(out_flat.reshape(N, H, W, Cout), (0, 3, 1, 2))


def ref_forward(x_nchw, params):
    """Pure-JAX reference mirroring the PyTorch BasicBlock (training-mode BN)."""
    w1, g1, b1, w2, g2, b2, wsc, gsc, bsc = params
    x = jnp.transpose(x_nchw, (0, 2, 3, 1))
    dn = ('NHWC', 'HWIO', 'NHWC')

    def bn(y, g, b):
        m = y.mean((0, 1, 2), keepdims=True)
        v = ((y - m) ** 2).mean((0, 1, 2), keepdims=True)
        return (y - m) * lax.rsqrt(v + EPS) * g.reshape(1, 1, 1, -1) \
            + b.reshape(1, 1, 1, -1)

    o = lax.conv_general_dilated(x, w1, (1, 1), 'SAME', dimension_numbers=dn)
    o = jnp.maximum(bn(o, g1, b1), 0.0)
    o = lax.conv_general_dilated(o, w2, (1, 1), 'SAME', dimension_numbers=dn)
    o = bn(o, g2, b2)
    s = lax.conv_general_dilated(x, wsc.reshape(1, 1, *wsc.shape), (1, 1),
                                 'VALID', dimension_numbers=dn)
    s = bn(s, gsc, bsc)
    return jnp.transpose(jnp.maximum(o + s, 0.0), (0, 3, 1, 2))


if __name__ == "__main__":
    # BasicBlock(in_planes=4, planes=8, stride=1) -> projection shortcut active.
    # TODO(synk): stride>1 variants would need strided row/band selection.
    N, Cin, Cout, H, W = 2, 4, 8, 16, 16

    key = jax.random.PRNGKey(0)
    ks = jax.random.split(key, 10)
    x = jax.random.normal(ks[0], (N, Cin, H, W), jnp.float32)

    w1 = jax.random.normal(ks[1], (3, 3, Cin, Cout), jnp.float32) * 0.1
    g1 = 1.0 + 0.1 * jax.random.normal(ks[2], (1, Cout), jnp.float32)
    b1 = 0.1 * jax.random.normal(ks[3], (1, Cout), jnp.float32)
    w2 = jax.random.normal(ks[4], (3, 3, Cout, Cout), jnp.float32) * 0.1
    g2 = 1.0 + 0.1 * jax.random.normal(ks[5], (1, Cout), jnp.float32)
    b2 = 0.1 * jax.random.normal(ks[6], (1, Cout), jnp.float32)
    wsc = jax.random.normal(ks[7], (Cin, Cout), jnp.float32) * 0.1
    gsc = 1.0 + 0.1 * jax.random.normal(ks[8], (1, Cout), jnp.float32)
    bsc = 0.1 * jax.random.normal(ks[9], (1, Cout), jnp.float32)

    params = (w1, g1, b1, w2, g2, b2, wsc, gsc, bsc)

    out = jax.block_until_ready(basic_block_forward(x, params))
    ref = jax.block_until_ready(ref_forward(x, params))

    assert out.shape == (N, Cout, H, W), out.shape
    assert jnp.allclose(out, ref, atol=1e-4, rtol=1e-4), \
        float(jnp.max(jnp.abs(out - ref)))
    print("KERNEL_OK")
</pallas_src>

<mosaic_0001>
module attributes {stable_mosaic.version = 11 : i64} {
  func.func @kernel(%arg0: memref<32x64xf32, #tpu.memory_space<vmem>>, %arg1: memref<192x256xf32, #tpu.memory_space<vmem>>, %arg2: memref<384x128xf32, #tpu.memory_space<vmem>>, %arg3: memref<136x128xf32, #tpu.memory_space<vmem>>, %arg4: memref<32x128xf32, #tpu.memory_space<vmem>>) attributes {dimension_semantics = [], scalar_prefetch = 0 : i64, scratch_operands = 0 : i64, tpu.core_type = #tpu.core_type<tc>} {
    %c0 = arith.constant 0 : index
    %c0_0 = arith.constant 0 : index
    %0 = vector.load %arg3[%c0, %c0_0] : memref<136x128xf32, #tpu.memory_space<vmem>>, vector<128x128xf32>
    %c128 = arith.constant 128 : index
    %c0_1 = arith.constant 0 : index
    %1 = vector.load %arg3[%c128, %c0_1] : memref<136x128xf32, #tpu.memory_space<vmem>>, vector<8x128xf32>
    %2 = vector.extract_strided_slice %1 {offsets = [0, 0], sizes = [1, 128], strides = [1, 1]} : vector<8x128xf32> to vector<1x128xf32>
    %3 = vector.extract_strided_slice %1 {offsets = [1, 0], sizes = [1, 128], strides = [1, 1]} : vector<8x128xf32> to vector<1x128xf32>
    %4 = vector.extract_strided_slice %1 {offsets = [2, 0], sizes = [1, 128], strides = [1, 1]} : vector<8x128xf32> to vector<1x128xf32>
    %5 = vector.extract_strided_slice %1 {offsets = [3, 0], sizes = [1, 128], strides = [1, 1]} : vector<8x128xf32> to vector<1x128xf32>
    %6 = vector.extract_strided_slice %1 {offsets = [4, 0], sizes = [1, 128], strides = [1, 1]} : vector<8x128xf32> to vector<1x128xf32>
    %7 = vector.extract_strided_slice %1 {offsets = [5, 0], sizes = [1, 128], strides = [1, 1]} : vector<8x128xf32> to vector<1x128xf32>
    %8 = tpu.iota {dimensions = array<i32: 0>} : vector<32x1xi32>
    %c0_i32 = arith.constant 0 : i32
    %9 = vector.broadcast %c0_i32 : i32 to vector<32x1xi32>
    %10 = arith.cmpi ne, %8, %9 : vector<32x1xi32>
    %c15_i32 = arith.constant 15 : i32
    %11 = vector.broadcast %c15_i32 : i32 to vector<32x1xi32>
    %12 = arith.cmpi ne, %8, %11 : vector<32x1xi32>
    %c16_i32 = arith.constant 16 : i32
    %13 = vector.broadcast %c16_i32 : i32 to vector<32x1xi32>
    %14 = arith.cmpi ne, %8, %13 : vector<32x1xi32>
    %15 = arith.andi %10, %14 : vector<32x1xi1>
    %c31_i32 = arith.constant 31 : i32
    %16 = vector.broadcast %c31_i32 : i32 to vector<32x1xi32>
    %17 = arith.cmpi ne, %8, %16 : vector<32x1xi32>
    %18 = arith.andi %12, %17 : vector<32x1xi1>
    %c0_2 = arith.constant 0 : index
    %c0_3 = arith.constant 0 : index
    %19 = vector.load %arg0[%c0_2, %c0_3] : memref<32x64xf32, #tpu.memory_space<vmem>>, vector<32x64xf32>
    %c1_i32 = arith.constant 1 : i32
    %20 = tpu.dynamic_rotate %19 by %c1_i32 dim 0 : vector<32x64xf32>, i32 -> vector<32x64xf32>
    %cst = arith.constant 0.000000e+00 : f32
    %21 = vector.shape_cast %15 : vector<32x1xi1> to vector<32x1xi1>
    %22 = vector.broadcast %21 : vector<32x1xi1> to vector<32x64xi1>
    %23 = vector.broadcast %cst : f32 to vector<32x64xf32>
    %24 = arith.select %22, %20, %23 : vector<32x64xi1>, vector<32x64xf32>
    %c31_i32_4 = arith.constant 31 : i32
    %25 = tpu.dynamic_rotate %19 by %c31_i32_4 dim 0 : vector<32x64xf32>, i32 -> vector<32x64xf32>
    %cst_5 = arith.constant 0.000000e+00 : f32
    %26 = vector.shape_cast %18 : vector<32x1xi1> to vector<32x1xi1>
    %27 = vector.broadcast %26 : vector<32x1xi1> to vector<32x64xi1>
    %28 = vector.broadcast %cst_5 : f32 to vector<32x64xf32>
    %29 = arith.select %27, %25, %28 : vector<32x64xi1>, vector<32x64xf32>
    %30 = tpu.concatenate %24, %19, %29 in 1 : vector<32x64xf32>, vector<32x64xf32>, vector<32x64xf32> -> vector<32x192xf32>
    %c0_6 = arith.constant 0 : index
    %c0_7 = arith.constant 0 : index
    %31 = vector.load %arg1[%c0_6, %c0_7] : memref<192x256xf32, #tpu.memory_space<vmem>>, vector<192x256xf32>
    %cst_8 = arith.constant dense<0.000000e+00> : vector<32x256xf32>
    %32 = tpu.matmul %30, %31, %cst_8 {dimension_numbers = #tpu.dot_dimension_numbers<[1], [0], [0], [1], [0, 0, 1, 1], [], []>} : vector<32x192xf32>, vector<192x256xf32>, vector<32x256xf32> -> vector<32x256xf32>
    %33 = vector.extract_strided_slice %32 {offsets = [0, 0], sizes = [32, 128], strides = [1, 1]} : vector<32x256xf32> to vector<32x128xf32>
    %34 = vector.extract_strided_slice %32 {offsets = [0, 128], sizes = [32, 128], strides = [1, 1]} : vector<32x256xf32> to vector<32x128xf32>
    %cst_9 = arith.constant dense<0.000000e+00> : vector<128xf32>
    %35 = vector.multi_reduction <add>, %33, %cst_9 [0] : vector<32x128xf32> to vector<128xf32>
    %36 = vector.shape_cast %35 : vector<128xf32> to vector<1x128xf32>
    %37 = arith.mulf %33, %33 : vector<32x128xf32>
    %cst_10 = arith.constant dense<0.000000e+00> : vector<128xf32>
    %38 = vector.multi_reduction <add>, %37, %cst_10 [0] : vector<32x128xf32> to vector<128xf32>
    %39 = vector.shape_cast %38 : vector<128xf32> to vector<1x128xf32>
    %40 = tpu.concatenate %36, %39 in 0 : vector<1x128xf32>, vector<1x128xf32> -> vector<2x128xf32>
    %cst_11 = arith.constant dense<0.000000e+00> : vector<2x128xf32>
    %41 = tpu.matmul %40, %0, %cst_11 {dimension_numbers = #tpu.dot_dimension_numbers<[1], [0], [0], [1], [0, 0, 1, 1], [], []>} : vector<2x128xf32>, vector<128x128xf32>, vector<2x128xf32> -> vector<2x128xf32>
    %cst_12 = arith.constant 0.001953125 : f32
    %42 = vector.broadcast %cst_12 : f32 to vector<2x128xf32>
    %43 = arith.mulf %41, %42 : vector<2x128xf32>
    %44 = vector.extract_strided_slice %43 {offsets = [0, 0], sizes = [1, 128], strides = [1, 1]} : vector<2x128xf32> to vector<1x128xf32>
    %45 = vector.extract_strided_slice %43 {offsets = [1, 0], sizes = [1, 128], strides = [1, 1]} : vector<2x128xf32> to vector<1x128xf32>
    %46 = arith.mulf %44, %44 : vector<1x128xf32>
    %47 = arith.subf %45, %46 : vector<1x128xf32>
    %cst_13 = arith.constant 9.99999974E-6 : f32
    %48 = vector.broadcast %cst_13 : f32 to vector<1x128xf32>
    %49 = arith.addf %47, %48 : vector<1x128xf32>
    %50 = math.rsqrt %49 : vector<1x128xf32>
    %51 = arith.mulf %50, %2 : vector<1x128xf32>
    %52 = vector.broadcast %51 : vector<1x128xf32> to vector<32x128xf32>
    %53 = arith.mulf %33, %52 : vector<32x128xf32>
    %54 = arith.mulf %44, %51 : vector<1x128xf32>
    %55 = arith.subf %3, %54 : vector<1x128xf32>
    %56 = vector.broadcast %55 : vector<1x128xf32> to vector<32x128xf32>
    %57 = arith.addf %53, %56 : vector<32x128xf32>
    %cst_14 = arith.constant 0.000000e+00 : f32
    %58 = vector.broadcast %cst_14 : f32 to vector<32x128xf32>
    %59 = arith.maximumf %57, %58 : vector<32x128xf32>
    %c1_i32_15 = arith.constant 1 : i32
    %60 = tpu.dynamic_rotate %59 by %c1_i32_15 dim 0 : vector<32x128xf32>, i32 -> vector<32x128xf32>
    %cst_16 = arith.constant 0.000000e+00 : f32
    %61 = vector.shape_cast %15 : vector<32x1xi1> to vector<32x1xi1>
    %62 = vector.broadcast %61 : vector<32x1xi1> to vector<32x128xi1>
    %63 = vector.broadcast %cst_16 : f32 to vector<32x128xf32>
    %64 = arith.select %62, %60, %63 : vector<32x128xi1>, vector<32x128xf32>
    %c31_i32_17 = arith.constant 31 : i32
    %65 = tpu.dynamic_rotate %59 by %c31_i32_17 dim 0 : vector<32x128xf32>, i32 -> vector<32x128xf32>
    %cst_18 = arith.constant 0.000000e+00 : f32
    %66 = vector.shape_cast %18 : vector<32x1xi1> to vector<32x1xi1>
    %67 = vector.broadcast %66 : vector<32x1xi1> to vector<32x128xi1>
    %68 = vector.broadcast %cst_18 : f32 to vector<32x128xf32>
    %69 = arith.select %67, %65, %68 : vector<32x128xi1>, vector<32x128xf32>
    %70 = tpu.concatenate %64, %59, %69 in 1 : vector<32x128xf32>, vector<32x128xf32>, vector<32x128xf32> -> vector<32x384xf32>
    %c0_19 = arith.constant 0 : index
    %c0_20 = arith.constant 0 : index
    %71 = vector.load %arg2[%c0_19, %c0_20] : memref<384x128xf32, #tpu.memory_space<vmem>>, vector<384x128xf32>
    %cst_21 = arith.constant dense<0.000000e+00> : vector<32x128xf32>
    %72 = tpu.matmul %70, %71, %cst_21 {dimension_numbers = #tpu.dot_dimension_numbers<[1], [0], [0], [1], [0, 0, 1, 1], [], []>} : vector<32x384xf32>, vector<384x128xf32>, vector<32x128xf32> -> vector<32x128xf32>
    %cst_22 = arith.constant dense<0.000000e+00> : vector<128xf32>
    %73 = vector.multi_reduction <add>, %72, %cst_22 [0] : vector<32x128xf32> to vector<128xf32>
    %74 = vector.shape_cast %73 : vector<128xf32> to vector<1x128xf32>
    %75 = arith.mulf %72, %72 : vector<32x128xf32>
    %cst_23 = arith.constant dense<0.000000e+00> : vector<128xf32>
    %76 = vector.multi_reduction <add>, %75, %cst_23 [0] : vector<32x128xf32> to vector<128xf32>
    %77 = vector.shape_cast %76 : vector<128xf32> to vector<1x128xf32>
    %78 = tpu.concatenate %74, %77 in 0 : vector<1x128xf32>, vector<1x128xf32> -> vector<2x128xf32>
    %cst_24 = arith.constant dense<0.000000e+00> : vector<128xf32>
    %79 = vector.multi_reduction <add>, %34, %cst_24 [0] : vector<32x128xf32> to vector<128xf32>
    %80 = vector.shape_cast %79 : vector<128xf32> to vector<1x128xf32>
    %81 = arith.mulf %34, %34 : vector<32x128xf32>
    %cst_25 = arith.constant dense<0.000000e+00> : vector<128xf32>
    %82 = vector.multi_reduction <add>, %81, %cst_25 [0] : vector<32x128xf32> to vector<128xf32>
    %83 = vector.shape_cast %82 : vector<128xf32> to vector<1x128xf32>
    %84 = tpu.concatenate %80, %83 in 0 : vector<1x128xf32>, vector<1x128xf32> -> vector<2x128xf32>
    %85 = tpu.concatenate %78, %84 in 0 : vector<2x128xf32>, vector<2x128xf32> -> vector<4x128xf32>
    %cst_26 = arith.constant dense<0.000000e+00> : vector<4x128xf32>
    %86 = tpu.matmul %85, %0, %cst_26 {dimension_numbers = #tpu.dot_dimension_numbers<[1], [0], [0], [1], [0, 0, 1, 1], [], []>} : vector<4x128xf32>, vector<128x128xf32>, vector<4x128xf32> -> vector<4x128xf32>
    %cst_27 = arith.constant 0.001953125 : f32
    %87 = vector.broadcast %cst_27 : f32 to vector<4x128xf32>
    %88 = arith.mulf %86, %87 : vector<4x128xf32>
    %89 = vector.extract_strided_slice %88 {offsets = [0, 0], sizes = [1, 128], strides = [1, 1]} : vector<4x128xf32> to vector<1x128xf32>
    %90 = vector.extract_strided_slice %88 {offsets = [1, 0], sizes = [1, 128], strides = [1, 1]} : vector<4x128xf32> to vector<1x128xf32>
    %91 = arith.mulf %89, %89 : vector<1x128xf32>
    %92 = arith.subf %90, %91 : vector<1x128xf32>
    %cst_28 = arith.constant 9.99999974E-6 : f32
    %93 = vector.broadcast %cst_28 : f32 to vector<1x128xf32>
    %94 = arith.addf %92, %93 : vector<1x128xf32>
    %95 = math.rsqrt %94 : vector<1x128xf32>
    %96 = arith.mulf %95, %4 : vector<1x128xf32>
    %97 = vector.broadcast %96 : vector<1x128xf32> to vector<32x128xf32>
    %98 = arith.mulf %72, %97 : vector<32x128xf32>
    %99 = arith.mulf %89, %96 : vector<1x128xf32>
    %100 = arith.subf %5, %99 : vector<1x128xf32>
    %101 = vector.broadcast %100 : vector<1x128xf32> to vector<32x128xf32>
    %102 = arith.addf %98, %101 : vector<32x128xf32>
    %103 = vector.extract_strided_slice %88 {offsets = [2, 0], sizes = [1, 128], strides = [1, 1]} : vector<4x128xf32> to vector<1x128xf32>
    %104 = vector.extract_strided_slice %88 {offsets = [3, 0], sizes = [1, 128], strides = [1, 1]} : vector<4x128xf32> to vector<1x128xf32>
    %105 = arith.mulf %103, %103 : vector<1x128xf32>
    %106 = arith.subf %104, %105 : vector<1x128xf32>
    %cst_29 = arith.constant 9.99999974E-6 : f32
    %107 = vector.broadcast %cst_29 : f32 to vector<1x128xf32>
    %108 = arith.addf %106, %107 : vector<1x128xf32>
    %109 = math.rsqrt %108 : vector<1x128xf32>
    %110 = arith.mulf %109, %6 : vector<1x128xf32>
    %111 = vector.broadcast %110 : vector<1x128xf32> to vector<32x128xf32>
    %112 = arith.mulf %34, %111 : vector<32x128xf32>
    %113 = arith.mulf %103, %110 : vector<1x128xf32>
    %114 = arith.subf %7, %113 : vector<1x128xf32>
    %115 = vector.broadcast %114 : vector<1x128xf32> to vector<32x128xf32>
    %116 = arith.addf %112, %115 : vector<32x128xf32>
    %117 = arith.addf %102, %116 : vector<32x128xf32>
    %cst_30 = arith.constant 0.000000e+00 : f32
    %118 = vector.broadcast %cst_30 : f32 to vector<32x128xf32>
    %119 = arith.maximumf %117, %118 : vector<32x128xf32>
    %c0_31 = arith.constant 0 : index
    %c0_32 = arith.constant 0 : index
    %120 = vector.load %arg4[%c0_31, %c0_32] : memref<32x128xf32, #tpu.memory_space<vmem>>, vector<32x128xf32>
    tpu.vector_store %arg4[%c0_31, %c0_32], %119 {strides = array<i32>} : memref<32x128xf32, #tpu.memory_space<vmem>>, vector<32x128xf32>,
    return
  }
}

</mosaic_0001>

<llo_original>
// kernel: tpu_custom_call.1
$region0: #{tpu_custom_call.1}
  #allocation0 [shape = 'u32[]', space=smem, size = 0x4, offset = 0x4, fixed_abs, tag = 'smem constant byte address 0x4 - core index']
  #allocation1 [shape = 'u32[144,128]{1,0:T(1,128)}', space=vmem, size = 0x12000, scoped, tag = 'internal scratch']
  %s0 = inlined_call_operand.hbm [shape: f32[32,64], index: 0, kind: input, shape index: {}]
  %s1 = inlined_call_operand.hbm [shape: f32[192,256], index: 1, kind: input, shape index: {}]
  %s2 = inlined_call_operand.hbm [shape: f32[384,128], index: 2, kind: input, shape index: {}]
  %s3 = inlined_call_operand.hbm [shape: f32[136,128], index: 3, kind: input, shape index: {}]
  %s4 = inlined_call_operand.hbm [shape: f32[32,128], index: 4, kind: output, shape index: {}]
  %s5 = sld [smem:[#allocation0]]
  $region42: #{tpu_custom_call.1} parent=0
    _
  %s7 = ssub.s32 1, %s5
  %s8 = scalar_select 0, %s7, %s5
  $region1: #{tpu_custom_call.1} parent=0
    #allocation2 [shape = 'u8[16384]{0}', space=vmem, size = 0x4000, scoped, tag = 'input window, operand 0, single buffered']
    #allocation3 [shape = 's32[1]{0}', space=sflag, size = 0x4, scoped, tag = 'scoped memory for tpu_custom_call.1']
    #allocation4 [shape = 's32[1]{0}', space=sflag, size = 0x4, scoped, tag = 'scoped memory for tpu_custom_call.1']
    #allocation5 [shape = 'u8[196608]{0}', space=vmem, size = 0x30000, scoped, tag = 'input window, operand 1, single buffered']
    #allocation6 [shape = 's32[1]{0}', space=sflag, size = 0x4, scoped, tag = 'scoped memory for tpu_custom_call.1']
    #allocation7 [shape = 'u8[196608]{0}', space=vmem, size = 0x30000, scoped, tag = 'input window, operand 2, single buffered']
    #allocation8 [shape = 'u8[69632]{0}', space=vmem, size = 0x11000, scoped, tag = 'input window, operand 3, single buffered']
    #allocation9 [shape = 's32[1]{0}', space=sflag, size = 0x4, scoped, tag = 'scoped memory for tpu_custom_call.1']
    #allocation10 [shape = 'u8[16384]{0}', space=vmem, size = 0x4000, scoped, tag = 'output window, operand 0, single buffered']
    %9 = vsyncpa [#allocation3], 0
    %10 = vsyncpa [#allocation6], 0
    %11 = vsyncpa [#allocation9], 0
    %12 = vsyncpa [#allocation4], 0
    // Predicated region
    $region2: #{tpu_custom_call.1} parent=1 // pred_check
      _
    $region3: #{tpu_custom_call.1} parent=1 // pred_check_branch
      %14 = sbr.rel (0) target = $region5
    $region4: #{tpu_custom_call.1} parent=1 // pred_region
      %s16 = ssub.s32 512, 512
      %17 = vsyncadd [#allocation3], %s16
      %s18 = sshll.u32 [#allocation2], 4
      %s19 = int_to_ptr.vmem [resolvable:$true] %s18
      %24 = dma.hbm_to_vmem [thread:$0]  %s0, 512, %s19, [#allocation3], 128, 128, 8
    $region5: #{tpu_custom_call.1} parent=1 // pred_fallthru
      _
    // Predicated region
    $region6: #{tpu_custom_call.1} parent=1 // pred_check
      _
    $region7: #{tpu_custom_call.1} parent=1 // pred_check_branch
      %26 = sbr.rel (0) target = $region9
    $region8: #{tpu_custom_call.1} parent=1 // pred_region
      %s28 = ssub.s32 6144, 6144
      %29 = vsyncadd [#allocation6], %s28
      %s30 = sshll.u32 [#allocation5], 4
      %s31 = int_to_ptr.vmem [resolvable:$true] %s30
      %36 = dma.hbm_to_vmem [thread:$0]  %s1, 6144, %s31, [#allocation6], 256, 256, 16
    $region9: #{tpu_custom_call.1} parent=1 // pred_fallthru
      _
    // Predicated region
    $region10: #{tpu_custom_call.1} parent=1 // pred_check
      _
    $region11: #{tpu_custom_call.1} parent=1 // pred_check_branch
      %38 = sbr.rel (0) target = $region13
    $region12: #{tpu_custom_call.1} parent=1 // pred_region
      %s40 = ssub.s32 6144, 6144
      %41 = vsyncadd [#allocation6], %s40
      %s42 = sshll.u32 [#allocation7], 4
      %s43 = int_to_ptr.vmem [resolvable:$true] %s42
      %48 = dma.hbm_to_vmem [thread:$0]  %s2, 6144, %s43, [#allocation6], 128, 128, 8
    $region13: #{tpu_custom_call.1} parent=1 // pred_fallthru
      _
    // Predicated region
    $region14: #{tpu_custom_call.1} parent=1 // pred_check
      _
    $region15: #{tpu_custom_call.1} parent=1 // pred_check_branch
      %50 = sbr.rel (0) target = $region17
    $region16: #{tpu_custom_call.1} parent=1 // pred_region
      %s52 = ssub.s32 2176, 2176
      %53 = vsyncadd [#allocation9], %s52
      %s54 = sshll.u32 [#allocation8], 4
      %s55 = int_to_ptr.vmem [resolvable:$true] %s54
      %60 = dma.hbm_to_vmem [thread:$0]  %s3, 2176, %s55, [#allocation9], 128, 128, 8
    $region17: #{tpu_custom_call.1} parent=1 // pred_fallthru
      _
    // Predicated region
    $region18: #{tpu_custom_call.1} parent=1 // pred_check
      _
    $region19: #{tpu_custom_call.1} parent=1 // pred_check_branch
      %62 = sbr.rel (0) target = $region21
    $region20: #{tpu_custom_call.1} parent=1 // pred_region
      %63 = dma.done [#allocation3], 512
    $region21: #{tpu_custom_call.1} parent=1 // pred_fallthru
      _
    // Predicated region
    $region22: #{tpu_custom_call.1} parent=1 // pred_check
      _
    $region23: #{tpu_custom_call.1} parent=1 // pred_check_branch
      %65 = sbr.rel (0) target = $region25
    $region24: #{tpu_custom_call.1} parent=1 // pred_region
      %66 = dma.done [#allocation6], 6144
    $region25: #{tpu_custom_call.1} parent=1 // pred_fallthru
      _
    // Predicated region
    $region26: #{tpu_custom_call.1} parent=1 // pred_check
      _
    $region27: #{tpu_custom_call.1} parent=1 // pred_check_branch
      %68 = sbr.rel (0) target = $region29
    $region28: #{tpu_custom_call.1} parent=1 // pred_region
      %69 = dma.done [#allocation6], 6144
    $region29: #{tpu_custom_call.1} parent=1 // pred_fallthru
      _
    // Predicated region
    $region30: #{tpu_custom_call.1} parent=1 // pred_check
      _
    $region31: #{tpu_custom_call.1} parent=1 // pred_check_branch
      %71 = sbr.rel (0) target = $region33
    $region32: #{tpu_custom_call.1} parent=1 // pred_region
      %72 = dma.done [#allocation9], 2176
    $region33: #{tpu_custom_call.1} parent=1 // pred_fallthru
      _
    %v73 = vld [vmem:[#allocation8] sm:$0xff]
    %v74 = vld [vmem:[#allocation8 + $0x8] sm:$0xff]
    %v75 = vld [vmem:[#allocation8 + $0x10] sm:$0xff]
    %v76 = vld [vmem:[#allocation8 + $0x18] sm:$0xff]
    %v77 = vld [vmem:[#allocation8 + $0x20] sm:$0xff]
    %v78 = vld [vmem:[#allocation8 + $0x28] sm:$0xff]
    %v79 = vld [vmem:[#allocation8 + $0x30] sm:$0xff]
    %v80 = vld [vmem:[#allocation8 + $0x38] sm:$0xff]
    %v81 = vld [vmem:[#allocation8 + $0x40] sm:$0xff]
    %v82 = vld [vmem:[#allocation8 + $0x48] sm:$0xff]
    %v83 = vld [vmem:[#allocation8 + $0x50] sm:$0xff]
    %v84 = vld [vmem:[#allocation8 + $0x58] sm:$0xff]
    %v85 = vld [vmem:[#allocation8 + $0x60] sm:$0xff]
    %v86 = vld [vmem:[#allocation8 + $0x68] sm:$0xff]
    %v87 = vld [vmem:[#allocation8 + $0x70] sm:$0xff]
    %v88 = vld [vmem:[#allocation8 + $0x78] sm:$0xff]
    %v89 = vld [vmem:[#allocation8 + $0x80] sm:$0xff]
    %v90 = vlaneseq
    %v91 = vshrl.u32 %v90, 7
    %v92 = vadd.s32 %v91, 8
    %v93 = vadd.s32 %v91, 16
    %v94 = vadd.s32 %v91, 24
    %vm95 = vcmp.ne.s32.totalorder %v91, 0
    %vm96 = vcmp.ne.s32.totalorder %v92, 0
    %vm97 = vcmp.ne.s32.totalorder %v93, 0
    %vm98 = vcmp.ne.s32.totalorder %v94, 0
    %vm99 = vcmp.ne.s32.totalorder %v91, 15
    %vm100 = vcmp.ne.s32.totalorder %v92, 15
    %vm101 = vcmp.ne.s32.totalorder %v93, 15
    %vm102 = vcmp.ne.s32.totalorder %v94, 15
    %vm103 = vcmp.ne.s32.totalorder %v91, 16
    %vm104 = vcmp.ne.s32.totalorder %v92, 16
    %vm105 = vcmp.ne.s32.totalorder %v93, 16
    %vm106 = vcmp.ne.s32.totalorder %v94, 16
    %vm107 = vmand %vm95, %vm103
    %vm108 = vmand %vm96, %vm104
    %vm109 = vmand %vm97, %vm105
    %vm110 = vmand %vm98, %vm106
    %vm111 = vcmp.ne.s32.totalorder %v91, 31
    %vm112 = vcmp.ne.s32.totalorder %v92, 31
    %vm113 = vcmp.ne.s32.totalorder %v93, 31
    %vm114 = vcmp.ne.s32.totalorder %v94, 31
    %vm115 = vmand %vm99, %vm111
    %vm116 = vmand %vm100, %vm112
    %vm117 = vmand %vm101, %vm113
    %vm118 = vmand %vm102, %vm114
    %v119 = vld [vmem:[#allocation2] sm:$0xff]
    %v120 = vld [vmem:[#allocation2 + $0x8] sm:$0xff]
    %v121 = vld [vmem:[#allocation2 + $0x10] sm:$0xff]
    %v122 = vld [vmem:[#allocation2 + $0x18] sm:$0xff]
    %v123 = vrot.slane %v119, 7
    %v124 = vrot.slane %v120, 7
    %v125 = vrot.slane %v121, 7
    %v126 = vrot.slane %v122, 7
    %vm127 = vcmp.lt.s32.totalorder %v91, 1
    %v128 = vsel %vm127, %v125, %v126
    %v129 = vsel %vm127, %v124, %v125
    %v130 = vsel %vm127, %v123, %v124
    %v131 = vsel %vm127, %v126, %v123
    %v132 = vsel %vm107, 1, 0
    %v133 = vsel %vm108, 1, 0
    %v134 = vsel %vm109, 1, 0
    %v135 = vsel %vm110, 1, 0
    %vm136 = vcmp.eq.s32.totalorder %v132, 1
    %vm137 = vcmp.eq.s32.totalorder %v133, 1
    %vm138 = vcmp.eq.s32.totalorder %v134, 1
    %vm139 = vcmp.eq.s32.totalorder %v135, 1
    %v140 = vsel %vm136, %v131, 0.0
    %v141 = vsel %vm137, %v130, 0.0
    %v142 = vsel %vm138, %v129, 0.0
    %v143 = vsel %vm139, %v128, 0.0
    %v144 = vrot.slane %v119, 1
    %v145 = vrot.slane %v120, 1
    %v146 = vrot.slane %v121, 1
    %v147 = vrot.slane %v122, 1
    %vm148 = vcmp.lt.s32.totalorder %v91, 7
    %v149 = vsel %vm148, %v146, %v147
    %v150 = vsel %vm148, %v145, %v146
    %v151 = vsel %vm148, %v144, %v145
    %v152 = vsel %vm148, %v147, %v144
    %v153 = vsel %vm115, 1, 0
    %v154 = vsel %vm116, 1, 0
    %v155 = vsel %vm117, 1, 0
    %v156 = vsel %vm118, 1, 0
    %vm157 = vcmp.eq.s32.totalorder %v153, 1
    %vm158 = vcmp.eq.s32.totalorder %v154, 1
    %vm159 = vcmp.eq.s32.totalorder %v155, 1
    %vm160 = vcmp.eq.s32.totalorder %v156, 1
    %v161 = vsel %vm157, %v151, 0.0
    %v162 = vsel %vm158, %v150, 0.0
    %v163 = vsel %vm159, %v149, 0.0
    %v164 = vsel %vm160, %v152, 0.0
    %169 = vrot.lane.b32.xlu0 %v119, 64
    %v170 = vpop.permute.xlu0 %169
    %171 = vrot.lane.b32.xlu0 %v120, 64
    %v172 = vpop.permute.xlu0 %171
    %173 = vrot.lane.b32.xlu0 %v121, 64
    %v174 = vpop.permute.xlu0 %173
    %175 = vrot.lane.b32.xlu0 %v122, 64
    %v176 = vpop.permute.xlu0 %175
    %vm181 = vcmask 523264
    %v182 = vsel %vm181, %v140, %v170
    %v183 = vsel %vm181, %v141, %v172
    %v184 = vsel %vm181, %v142, %v174
    %v185 = vsel %vm181, %v143, %v176
    %v186 = vld [vmem:[#allocation5] sm:$0xff]
    %v187 = vld [vmem:[#allocation5 + $0x8] sm:$0xff]
    %v188 = vld [vmem:[#allocation5 + $0x10] sm:$0xff]
    %v189 = vld [vmem:[#allocation5 + $0x18] sm:$0xff]
    %v190 = vld [vmem:[#allocation5 + $0x20] sm:$0xff]
    %v191 = vld [vmem:[#allocation5 + $0x28] sm:$0xff]
    %v192 = vld [vmem:[#allocation5 + $0x30] sm:$0xff]
    %v193 = vld [vmem:[#allocation5 + $0x38] sm:$0xff]
    %v194 = vld [vmem:[#allocation5 + $0x40] sm:$0xff]
    %v195 = vld [vmem:[#allocation5 + $0x48] sm:$0xff]
    %v196 = vld [vmem:[#allocation5 + $0x50] sm:$0xff]
    %v197 = vld [vmem:[#allocation5 + $0x58] sm:$0xff]
    %v198 = vld [vmem:[#allocation5 + $0x60] sm:$0xff]
    %v199 = vld [vmem:[#allocation5 + $0x68] sm:$0xff]
    %v200 = vld [vmem:[#allocation5 + $0x70] sm:$0xff]
    %v201 = vld [vmem:[#allocation5 + $0x78] sm:$0xff]
    %v202 = vld [vmem:[#allocation5 + $0x80] sm:$0xff]
    %v203 = vld [vmem:[#allocation5 + $0x88] sm:$0xff]
    %v204 = vld [vmem:[#allocation5 + $0x90] sm:$0xff]
    %v205 = vld [vmem:[#allocation5 + $0x98] sm:$0xff]
    %v206 = vld [vmem:[#allocation5 + $0xa0] sm:$0xff]
    %v207 = vld [vmem:[#allocation5 + $0xa8] sm:$0xff]
    %v208 = vld [vmem:[#allocation5 + $0xb0] sm:$0xff]
    %v209 = vld [vmem:[#allocation5 + $0xb8] sm:$0xff]
    %v210 = vld [vmem:[#allocation5 + $0xc0] sm:$0xff]
    %v211 = vld [vmem:[#allocation5 + $0xc8] sm:$0xff]
    %v212 = vld [vmem:[#allocation5 + $0xd0] sm:$0xff]
    %v213 = vld [vmem:[#allocation5 + $0xd8] sm:$0xff]
    %v214 = vld [vmem:[#allocation5 + $0xe0] sm:$0xff]
    %v215 = vld [vmem:[#allocation5 + $0xe8] sm:$0xff]
    %v216 = vld [vmem:[#allocation5 + $0xf0] sm:$0xff]
    %v217 = vld [vmem:[#allocation5 + $0xf8] sm:$0xff]
    %v218 = vld [vmem:[#allocation5 + $0x100] sm:$0xff]
    %v219 = vld [vmem:[#allocation5 + $0x108] sm:$0xff]
    %v220 = vld [vmem:[#allocation5 + $0x110] sm:$0xff]
    %v221 = vld [vmem:[#allocation5 + $0x118] sm:$0xff]
    %v222 = vld [vmem:[#allocation5 + $0x120] sm:$0xff]
    %v223 = vld [vmem:[#allocation5 + $0x128] sm:$0xff]
    %v224 = vld [vmem:[#allocation5 + $0x130] sm:$0xff]
    %v225 = vld [vmem:[#allocation5 + $0x138] sm:$0xff]
    %v226 = vld [vmem:[#allocation5 + $0x140] sm:$0xff]
    %v227 = vld [vmem:[#allocation5 + $0x148] sm:$0xff]
    %v228 = vld [vmem:[#allocation5 + $0x150] sm:$0xff]
    %v229 = vld [vmem:[#allocation5 + $0x158] sm:$0xff]
    %v230 = vld [vmem:[#allocation5 + $0x160] sm:$0xff]
    %v231 = vld [vmem:[#allocation5 + $0x168] sm:$0xff]
    %v232 = vld [vmem:[#allocation5 + $0x170] sm:$0xff]
    %v233 = vld [vmem:[#allocation5 + $0x178] sm:$0xff]
    %v235 = vsel %vm181, %v161, 0
    %v238 = vsel %vm181, %v162, 0
    %v241 = vsel %vm181, %v163, 0
    %v244 = vsel %vm181, %v164, 0
    %246 = vmatprep.subr.mxu0 %v187
    %247 = vmatpush1.msra.mxu0 %v186
    %248 = vmatprep.subr.mxu0 %v189
    %249 = vmatpush1.msra.mxu0 %v188
    %250 = vmatprep.subr.mxu0 %v191
    %251 = vmatpush1.msra.mxu0 %v190
    %252 = vmatprep.subr.mxu0 %v193
    %253 = vmatpush1.msra.mxu0 %v192
    %254 = vmatprep.subr.mxu0 %v195
    %255 = vmatpush1.msra.mxu0 %v194
    %256 = vmatprep.subr.mxu0 %v197
    %257 = vmatpush1.msra.mxu0 %v196
    %258 = vmatprep.subr.mxu0 %v199
    %259 = vmatpush1.msra.mxu0 %v198
    %260 = vmatprep.subr.mxu0 %v201
    %261 = vmatpush1.msra.mxu0 %v200
    %262 = vmatprep.subr.mxu0 %v203
    %263 = vmatpush1.msra.mxu0 %v202
    %264 = vmatprep.subr.mxu0 %v205
    %265 = vmatpush1.msra.mxu0 %v204
    %266 = vmatprep.subr.mxu0 %v207
    %267 = vmatpush1.msra.mxu0 %v206
    %268 = vmatprep.subr.mxu0 %v209
    %269 = vmatpush1.msra.mxu0 %v208
    %270 = vmatprep.subr.mxu0 %v211
    %271 = vmatpush1.msra.mxu0 %v210
    %272 = vmatprep.subr.mxu0 %v213
    %273 = vmatpush1.msra.mxu0 %v212
    %274 = vmatprep.subr.mxu0 %v215
    %275 = vmatpush1.msra.mxu0 %v214
    %276 = vmatprep.subr.mxu0 %v217
    %277 = vmatpush1.msra.mxu0 %v216
    %278 = vmatprep.subr.mxu0 %v219
    %279 = vmatpush1.msra.mxu0 %v218
    %280 = vmatprep.subr.mxu0 %v221
    %281 = vmatpush1.msra.mxu0 %v220
    %282 = vmatprep.subr.mxu0 %v223
    %283 = vmatpush1.msra.mxu0 %v222
    %284 = vmatprep.subr.mxu0 %v225
    %285 = vmatpush1.msra.mxu0 %v224
    %286 = vmatprep.subr.mxu0 %v227
    %287 = vmatpush1.msra.mxu0 %v226
    %288 = vmatprep.subr.mxu0 %v229
    %289 = vmatpush1.msra.mxu0 %v228
    %290 = vmatprep.subr.mxu0 %v231
    %291 = vmatpush1.msra.mxu0 %v230
    %292 = vmatprep.subr.mxu0 %v233
    %293 = vmatpush1.msra.mxu0 %v232
    %294 = vmatprep.subr.mxu0 0.0
    %295 = vmatpush1.msra.mxu0 0.0
    %296 = vmatprep.subr.mxu0 0.0
    %297 = vmatpush1.msra.mxu0 0.0
    %298 = vmatprep.subr.mxu0 0.0
    %299 = vmatpush1.msra.mxu0 0.0
    %300 = vmatprep.subr.mxu0 0.0
    %301 = vmatpush1.msra.mxu0 0.0
    %302 = vmatprep.subr.mxu0 0.0
    %303 = vmatpush1.msra.mxu0 0.0
    %304 = vmatprep.subr.mxu0 0.0
    %305 = vmatpush1.msra.mxu0 0.0
    %306 = vmatprep.subr.mxu0 0.0
    %307 = vmatpush1.msra.mxu0 0.0
    %308 = vmatprep.subr.mxu0 0.0
    %309 = vmatpush1.msra.mxu0 0.0
    %310 = vmatprep.mubr.f32.mxu0 %v235
    %311 = vmatmul.mubr.f32.gmra.mrb[0].mxu0 %v182
    %v312 = vpop.f32.mrb[0].mxu0
    %v313 = vadd.f32 0.0, %v312
    %v314 = vpop.f32.mrb[0].mxu0
    %v315 = vadd.f32 0.0, %v314
    %316 = vmatprep.mubr.f32.mxu0 %v238
    %317 = vmatmul.mubr.f32.gmra.mrb[0].mxu0 %v183
    %v318 = vpop.f32.mrb[0].mxu0
    %v319 = vadd.f32 0.0, %v318
    %v320 = vpop.f32.mrb[0].mxu0
    %v321 = vadd.f32 0.0, %v320
    %322 = vmatprep.mubr.f32.mxu0 %v241
    %323 = vmatmul.mubr.f32.gmra.mrb[0].mxu0 %v184
    %v324 = vpop.f32.mrb[0].mxu0
    %v325 = vadd.f32 0.0, %v324
    %v326 = vpop.f32.mrb[0].mxu0
    %v327 = vadd.f32 0.0, %v326
    %328 = vmatprep.mubr.f32.mxu0 %v244
    %329 = vmatmul.mubr.f32.gmra.mrb[0].mxu0 %v185
    %v330 = vpop.f32.mrb[0].mxu0
    %v331 = vadd.f32 0.0, %v330
    %v332 = vpop.f32.mrb[0].mxu0
    %v333 = vadd.f32 0.0, %v332
    %334 = vdwg.mxu0
    %v335 = vadd.f32 %v313, %v319
    %v336 = vadd.f32 %v335, %v325
    %v337 = vadd.f32 %v336, %v331
    %v338 = vrot.slane %v337, 4
    %v339 = vadd.f32 %v337, %v338
    %v340 = vrot.slane %v339, 2
    %v341 = vadd.f32 %v339, %v340
    %v342 = vrot.slane %v341, 1
    %v343 = vadd.f32 %v341, %v342
    %v344 = vmul.f32 %v313, %v313
    %v345 = vmul.f32 %v319, %v319
    %v346 = vmul.f32 %v325, %v325
    %v347 = vmul.f32 %v331, %v331
    %v348 = vadd.f32 %v344, %v345
    %v349 = vadd.f32 %v348, %v346
    %v350 = vadd.f32 %v349, %v347
    %v351 = vrot.slane %v350, 4
    %v352 = vadd.f32 %v350, %v351
    %v353 = vrot.slane %v352, 2
    %v354 = vadd.f32 %v352, %v353
    %v355 = vrot.slane %v354, 1
    %v356 = vadd.f32 %v354, %v355
    %vm357 = vcmask 1040384
    %v358 = vsel %vm357, %v343, %v356
    %359 = vmatprep.subr.mxu0 0.0
    %360 = vmatpush1.msra.mxu0 %v73
    %361 = vmatprep.subr.mxu0 0.0
    %362 = vmatpush1.msra.mxu0 %v74
    %363 = vmatprep.subr.mxu0 0.0
    %364 = vmatpush1.msra.mxu0 %v75
    %365 = vmatprep.subr.mxu0 0.0
    %366 = vmatpush1.msra.mxu0 %v76
    %367 = vmatprep.subr.mxu0 0.0
    %368 = vmatpush1.msra.mxu0 %v77
    %369 = vmatprep.subr.mxu0 0.0
    %370 = vmatpush1.msra.mxu0 %v78
    %371 = vmatprep.subr.mxu0 0.0
    %372 = vmatpush1.msra.mxu0 %v79
    %373 = vmatprep.subr.mxu0 0.0
    %374 = vmatpush1.msra.mxu0 %v80
    %375 = vmatprep.subr.mxu0 0.0
    %376 = vmatpush1.msra.mxu0 %v81
    %377 = vmatprep.subr.mxu0 0.0
    %378 = vmatpush1.msra.mxu0 %v82
    %379 = vmatprep.subr.mxu0 0.0
    %380 = vmatpush1.msra.mxu0 %v83
    %381 = vmatprep.subr.mxu0 0.0
    %382 = vmatpush1.msra.mxu0 %v84
    %383 = vmatprep.subr.mxu0 0.0
    %384 = vmatpush1.msra.mxu0 %v85
    %385 = vmatprep.subr.mxu0 0.0
    %386 = vmatpush1.msra.mxu0 %v86
    %387 = vmatprep.subr.mxu0 0.0
    %388 = vmatpush1.msra.mxu0 %v87
    %389 = vmatprep.subr.mxu0 0.0
    %390 = vmatpush1.msra.mxu0 %v88
    %391 = vmatprep.subr.mxu0 0.0
    %392 = vmatpush1.msra.mxu0 0.0
    %393 = vmatprep.subr.mxu0 0.0
    %394 = vmatpush1.msra.mxu0 0.0
    %395 = vmatprep.subr.mxu0 0.0
    %396 = vmatpush1.msra.mxu0 0.0
    %397 = vmatprep.subr.mxu0 0.0
    %398 = vmatpush1.msra.mxu0 0.0
    %399 = vmatprep.subr.mxu0 0.0
    %400 = vmatpush1.msra.mxu0 0.0
    %401 = vmatprep.subr.mxu0 0.0
    %402 = vmatpush1.msra.mxu0 0.0
    %403 = vmatprep.subr.mxu0 0.0
    %404 = vmatpush1.msra.mxu0 0.0
    %405 = vmatprep.subr.mxu0 0.0
    %406 = vmatpush1.msra.mxu0 0.0
    %407 = vmatprep.subr.mxu0 0.0
    %408 = vmatpush1.msra.mxu0 0.0
    %409 = vmatprep.subr.mxu0 0.0
    %410 = vmatpush1.msra.mxu0 0.0
    %411 = vmatprep.subr.mxu0 0.0
    %412 = vmatpush1.msra.mxu0 0.0
    %413 = vmatprep.subr.mxu0 0.0
    %414 = vmatpush1.msra.mxu0 0.0
    %415 = vmatprep.subr.mxu0 0.0
    %416 = vmatpush1.msra.mxu0 0.0
    %417 = vmatprep.subr.mxu0 0.0
    %418 = vmatpush1.msra.mxu0 0.0
    %419 = vmatprep.subr.mxu0 0.0
    %420 = vmatpush1.msra.mxu0 0.0
    %421 = vmatprep.subr.mxu0 0.0
    %422 = vmatpush1.msra.mxu0 0.0
    %423 = vmatprep.mubr.f32.mxu0 0.0
    %424 = vmatmul.mubr.f32.gmra.mrb[0].mxu0 %v358
    %v425 = vpop.f32.mrb[0].mxu0
    %v426 = vadd.f32 0.0, %v425
    %v427 = vpop.f32.mrb[0].mxu0
    %428 = vdwg.mxu0
    %v429 = vmul.f32 %v426, 0.001953125
    %v430 = vmul.f32 %v429, %v429
    %v432 = vrot.slane %v430, 7
    %v434 = vsub.f32 %v429, %v432
    %v435 = vadd.f32 %v434, 1e-05
    %v436 = vrsqrt.pop %v435
    %v438 = vrot.slane %v89, 7
    %v440 = vmul.f32 %v436, %v438
    %v441 = vlaneseq
    %v442 = vshrl.u32 %v441, 7
    %v443 = vsub.s32 1, %v442
    %v444 = vrot.slane %v440, %v443
    %v445 = vmul.f32 %v313, %v444
    %v446 = vmul.f32 %v319, %v444
    %v447 = vmul.f32 %v325, %v444
    %v448 = vmul.f32 %v331, %v444
    %v450 = vrot.slane %v440, 1
    %v452 = vmul.f32 %v429, %v450
    %v454 = vrot.slane %v452, 7
    %v456 = vsub.f32 %v89, %v454
    %v457 = vlaneseq
    %v458 = vshrl.u32 %v457, 7
    %v459 = vsub.s32 1, %v458
    %v460 = vrot.slane %v456, %v459
    %v461 = vadd.f32 %v445, %v460
    %v462 = vadd.f32 %v446, %v460
    %v463 = vadd.f32 %v447, %v460
    %v464 = vadd.f32 %v448, %v460
    %v465 = vmax.f32 %v461, 0.0
    %v466 = vmax.f32 %v462, 0.0
    %v467 = vmax.f32 %v463, 0.0
    %v468 = vmax.f32 %v464, 0.0
    %v469 = vrot.slane %v465, 7
    %v470 = vrot.slane %v466, 7
    %v471 = vrot.slane %v467, 7
    %v472 = vrot.slane %v468, 7
    %v473 = vsel %vm127, %v471, %v472
    %v474 = vsel %vm127, %v470, %v471
    %v475 = vsel %vm127, %v469, %v470
    %v476 = vsel %vm127, %v472, %v469
    %v477 = vsel %vm136, %v476, 0.0
    %v478 = vsel %vm137, %v475, 0.0
    %v479 = vsel %vm138, %v474, 0.0
    %v480 = vsel %vm139, %v473, 0.0
    %v481 = vrot.slane %v465, 1
    %v482 = vrot.slane %v466, 1
    %v483 = vrot.slane %v467, 1
    %v484 = vrot.slane %v468, 1
    %v485 = vsel %vm148, %v483, %v484
    %v486 = vsel %vm148, %v482, %v483
    %v487 = vsel %vm148, %v481, %v482
    %v488 = vsel %vm148, %v484, %v481
    %v489 = vsel %vm157, %v487, 0.0
    %v490 = vsel %vm158, %v486, 0.0
    %v491 = vsel %vm159, %v485, 0.0
    %v492 = vsel %vm160, %v488, 0.0
    %v493 = vld [vmem:[#allocation7] sm:$0xff]
    %v494 = vld [vmem:[#allocation7 + $0x8] sm:$0xff]
    %v495 = vld [vmem:[#allocation7 + $0x10] sm:$0xff]
    %v496 = vld [vmem:[#allocation7 + $0x18] sm:$0xff]
    %v497 = vld [vmem:[#allocation7 + $0x20] sm:$0xff]
    %v498 = vld [vmem:[#allocation7 + $0x28] sm:$0xff]
    %v499 = vld [vmem:[#allocation7 + $0x30] sm:$0xff]
    %v500 = vld [vmem:[#allocation7 + $0x38] sm:$0xff]
    %v501 = vld [vmem:[#allocation7 + $0x40] sm:$0xff]
    %v502 = vld [vmem:[#allocation7 + $0x48] sm:$0xff]
    %v503 = vld [vmem:[#allocation7 + $0x50] sm:$0xff]
    %v504 = vld [vmem:[#allocation7 + $0x58] sm:$0xff]
    %v505 = vld [vmem:[#allocation7 + $0x60] sm:$0xff]
    %v506 = vld [vmem:[#allocation7 + $0x68] sm:$0xff]
    %v507 = vld [vmem:[#allocation7 + $0x70] sm:$0xff]
    %v508 = vld [vmem:[#allocation7 + $0x78] sm:$0xff]
    %v509 = vld [vmem:[#allocation7 + $0x80] sm:$0xff]
    %v510 = vld [vmem:[#allocation7 + $0x88] sm:$0xff]
    %v511 = vld [vmem:[#allocation7 + $0x90] sm:$0xff]
    %v512 = vld [vmem:[#allocation7 + $0x98] sm:$0xff]
    %v513 = vld [vmem:[#allocation7 + $0xa0] sm:$0xff]
    %v514 = vld [vmem:[#allocation7 + $0xa8] sm:$0xff]
    %v515 = vld [vmem:[#allocation7 + $0xb0] sm:$0xff]
    %v516 = vld [vmem:[#allocation7 + $0xb8] sm:$0xff]
    %v517 = vld [vmem:[#allocation7 + $0xc0] sm:$0xff]
    %v518 = vld [vmem:[#allocation7 + $0xc8] sm:$0xff]
    %v519 = vld [vmem:[#allocation7 + $0xd0] sm:$0xff]
    %v520 = vld [vmem:[#allocation7 + $0xd8] sm:$0xff]
    %v521 = vld [vmem:[#allocation7 + $0xe0] sm:$0xff]
    %v522 = vld [vmem:[#allocation7 + $0xe8] sm:$0xff]
    %v523 = vld [vmem:[#allocation7 + $0xf0] sm:$0xff]
    %v524 = vld [vmem:[#allocation7 + $0xf8] sm:$0xff]
    %v525 = vld [vmem:[#allocation7 + $0x100] sm:$0xff]
    %v526 = vld [vmem:[#allocation7 + $0x108] sm:$0xff]
    %v527 = vld [vmem:[#allocation7 + $0x110] sm:$0xff]
    %v528 = vld [vmem:[#allocation7 + $0x118] sm:$0xff]
    %v529 = vld [vmem:[#allocation7 + $0x120] sm:$0xff]
    %v530 = vld [vmem:[#allocation7 + $0x128] sm:$0xff]
    %v531 = vld [vmem:[#allocation7 + $0x130] sm:$0xff]
    %v532 = vld [vmem:[#allocation7 + $0x138] sm:$0xff]
    %v533 = vld [vmem:[#allocation7 + $0x140] sm:$0xff]
    %v534 = vld [vmem:[#allocation7 + $0x148] sm:$0xff]
    %v535 = vld [vmem:[#allocation7 + $0x150] sm:$0xff]
    %v536 = vld [vmem:[#allocation7 + $0x158] sm:$0xff]
    %v537 = vld [vmem:[#allocation7 + $0x160] sm:$0xff]
    %v538 = vld [vmem:[#allocation7 + $0x168] sm:$0xff]
    %v539 = vld [vmem:[#allocation7 + $0x170] sm:$0xff]
    %v540 = vld [vmem:[#allocation7 + $0x178] sm:$0xff]
    %541 = vmatprep.subr.mxu0 0.0
    %542 = vmatpush1.msra.mxu0 %v493
    %543 = vmatprep.subr.mxu0 0.0
    %544 = vmatpush1.msra.mxu0 %v494
    %545 = vmatprep.subr.mxu0 0.0
    %546 = vmatpush1.msra.mxu0 %v495
    %547 = vmatprep.subr.mxu0 0.0
    %548 = vmatpush1.msra.mxu0 %v496
    %549 = vmatprep.subr.mxu0 0.0
    %550 = vmatpush1.msra.mxu0 %v497
    %551 = vmatprep.subr.mxu0 0.0
    %552 = vmatpush1.msra.mxu0 %v498
    %553 = vmatprep.subr.mxu0 0.0
    %554 = vmatpush1.msra.mxu0 %v499
    %555 = vmatprep.subr.mxu0 0.0
    %556 = vmatpush1.msra.mxu0 %v500
    %557 = vmatprep.subr.mxu0 0.0
    %558 = vmatpush1.msra.mxu0 %v501
    %559 = vmatprep.subr.mxu0 0.0
    %560 = vmatpush1.msra.mxu0 %v502
    %561 = vmatprep.subr.mxu0 0.0
    %562 = vmatpush1.msra.mxu0 %v503
    %563 = vmatprep.subr.mxu0 0.0
    %564 = vmatpush1.msra.mxu0 %v504
    %565 = vmatprep.subr.mxu0 0.0
    %566 = vmatpush1.msra.mxu0 %v505
    %567 = vmatprep.subr.mxu0 0.0
    %568 = vmatpush1.msra.mxu0 %v506
    %569 = vmatprep.subr.mxu0 0.0
    %570 = vmatpush1.msra.mxu0 %v507
    %571 = vmatprep.subr.mxu0 0.0
    %572 = vmatpush1.msra.mxu0 %v508
    %573 = vmatprep.subr.mxu0 0.0
    %574 = vmatpush1.msra.mxu0 %v509
    %575 = vmatprep.subr.mxu0 0.0
    %576 = vmatpush1.msra.mxu0 %v510
    %577 = vmatprep.subr.mxu0 0.0
    %578 = vmatpush1.msra.mxu0 %v511
    %579 = vmatprep.subr.mxu0 0.0
    %580 = vmatpush1.msra.mxu0 %v512
    %581 = vmatprep.subr.mxu0 0.0
    %582 = vmatpush1.msra.mxu0 %v513
    %583 = vmatprep.subr.mxu0 0.0
    %584 = vmatpush1.msra.mxu0 %v514
    %585 = vmatprep.subr.mxu0 0.0
    %586 = vmatpush1.msra.mxu0 %v515
    %587 = vmatprep.subr.mxu0 0.0
    %588 = vmatpush1.msra.mxu0 %v516
    %589 = vmatprep.subr.mxu0 0.0
    %590 = vmatpush1.msra.mxu0 %v517
    %591 = vmatprep.subr.mxu0 0.0
    %592 = vmatpush1.msra.mxu0 %v518
    %593 = vmatprep.subr.mxu0 0.0
    %594 = vmatpush1.msra.mxu0 %v519
    %595 = vmatprep.subr.mxu0 0.0
    %596 = vmatpush1.msra.mxu0 %v520
    %597 = vmatprep.subr.mxu0 0.0
    %598 = vmatpush1.msra.mxu0 %v521
    %599 = vmatprep.subr.mxu0 0.0
    %600 = vmatpush1.msra.mxu0 %v522
    %601 = vmatprep.subr.mxu0 0.0
    %602 = vmatpush1.msra.mxu0 %v523
    %603 = vmatprep.subr.mxu0 0.0
    %604 = vmatpush1.msra.mxu0 %v524
    %605 = vmatprep.mubr.f32.mxu0 %v465
    %606 = vmatmul.mubr.f32.gmra.mrb[0].mxu0 %v477
    %v607 = vpop.f32.mrb[0].mxu0
    %v608 = vadd.f32 0.0, %v607
    %v609 = vpop.f32.mrb[0].mxu0
    %610 = vmatprep.mubr.f32.mxu0 %v466
    %611 = vmatmul.mubr.f32.gmra.mrb[0].mxu0 %v478
    %v612 = vpop.f32.mrb[0].mxu0
    %v613 = vadd.f32 0.0, %v612
    %v614 = vpop.f32.mrb[0].mxu0
    %615 = vmatprep.mubr.f32.mxu0 %v467
    %616 = vmatmul.mubr.f32.gmra.mrb[0].mxu0 %v479
    %v617 = vpop.f32.mrb[0].mxu0
    %v618 = vadd.f32 0.0, %v617
    %v619 = vpop.f32.mrb[0].mxu0
    %620 = vmatprep.mubr.f32.mxu0 %v468
    %621 = vmatmul.mubr.f32.gmra.mrb[0].mxu0 %v480
    %v622 = vpop.f32.mrb[0].mxu0
    %v623 = vadd.f32 0.0, %v622
    %v624 = vpop.f32.mrb[0].mxu0
    %625 = vdwg.mxu0
    %626 = vmatprep.subr.mxu0 0.0
    %627 = vmatpush1.msra.mxu0 %v525
    %628 = vmatprep.subr.mxu0 0.0
    %629 = vmatpush1.msra.mxu0 %v526
    %630 = vmatprep.subr.mxu0 0.0
    %631 = vmatpush1.msra.mxu0 %v527
    %632 = vmatprep.subr.mxu0 0.0
    %633 = vmatpush1.msra.mxu0 %v528
    %634 = vmatprep.subr.mxu0 0.0
    %635 = vmatpush1.msra.mxu0 %v529
    %636 = vmatprep.subr.mxu0 0.0
    %637 = vmatpush1.msra.mxu0 %v530
    %638 = vmatprep.subr.mxu0 0.0
    %639 = vmatpush1.msra.mxu0 %v531
    %640 = vmatprep.subr.mxu0 0.0
    %641 = vmatpush1.msra.mxu0 %v532
    %642 = vmatprep.subr.mxu0 0.0
    %643 = vmatpush1.msra.mxu0 %v533
    %644 = vmatprep.subr.mxu0 0.0
    %645 = vmatpush1.msra.mxu0 %v534
    %646 = vmatprep.subr.mxu0 0.0
    %647 = vmatpush1.msra.mxu0 %v535
    %648 = vmatprep.subr.mxu0 0.0
    %649 = vmatpush1.msra.mxu0 %v536
    %650 = vmatprep.subr.mxu0 0.0
    %651 = vmatpush1.msra.mxu0 %v537
    %652 = vmatprep.subr.mxu0 0.0
    %653 = vmatpush1.msra.mxu0 %v538
    %654 = vmatprep.subr.mxu0 0.0
    %655 = vmatpush1.msra.mxu0 %v539
    %656 = vmatprep.subr.mxu0 0.0
    %657 = vmatpush1.msra.mxu0 %v540
    %658 = vmatprep.subr.mxu0 0.0
    %659 = vmatpush1.msra.mxu0 0.0
    %660 = vmatprep.subr.mxu0 0.0
    %661 = vmatpush1.msra.mxu0 0.0
    %662 = vmatprep.subr.mxu0 0.0
    %663 = vmatpush1.msra.mxu0 0.0
    %664 = vmatprep.subr.mxu0 0.0
    %665 = vmatpush1.msra.mxu0 0.0
    %666 = vmatprep.subr.mxu0 0.0
    %667 = vmatpush1.msra.mxu0 0.0
    %668 = vmatprep.subr.mxu0 0.0
    %669 = vmatpush1.msra.mxu0 0.0
    %670 = vmatprep.subr.mxu0 0.0
    %671 = vmatpush1.msra.mxu0 0.0
    %672 = vmatprep.subr.mxu0 0.0
    %673 = vmatpush1.msra.mxu0 0.0
    %674 = vmatprep.subr.mxu0 0.0
    %675 = vmatpush1.msra.mxu0 0.0
    %676 = vmatprep.subr.mxu0 0.0
    %677 = vmatpush1.msra.mxu0 0.0
    %678 = vmatprep.subr.mxu0 0.0
    %679 = vmatpush1.msra.mxu0 0.0
    %680 = vmatprep.subr.mxu0 0.0
    %681 = vmatpush1.msra.mxu0 0.0
    %682 = vmatprep.subr.mxu0 0.0
    %683 = vmatpush1.msra.mxu0 0.0
    %684 = vmatprep.subr.mxu0 0.0
    %685 = vmatpush1.msra.mxu0 0.0
    %686 = vmatprep.subr.mxu0 0.0
    %687 = vmatpush1.msra.mxu0 0.0
    %688 = vmatprep.subr.mxu0 0.0
    %689 = vmatpush1.msra.mxu0 0.0
    %690 = vmatprep.mubr.f32.mxu0 0.0
    %691 = vmatmul.mubr.f32.gmra.mrb[0].mxu0 %v489
    %v692 = vpop.f32.mrb[0].mxu0
    %v693 = vadd.f32 %v608, %v692
    %v694 = vpop.f32.mrb[0].mxu0
    %695 = vmatprep.mubr.f32.mxu0 0.0
    %696 = vmatmul.mubr.f32.gmra.mrb[0].mxu0 %v490
    %v697 = vpop.f32.mrb[0].mxu0
    %v698 = vadd.f32 %v613, %v697
    %v699 = vpop.f32.mrb[0].mxu0
    %700 = vmatprep.mubr.f32.mxu0 0.0
    %701 = vmatmul.mubr.f32.gmra.mrb[0].mxu0 %v491
    %v702 = vpop.f32.mrb[0].mxu0
    %v703 = vadd.f32 %v618, %v702
    %v704 = vpop.f32.mrb[0].mxu0
    %705 = vmatprep.mubr.f32.mxu0 0.0
    %706 = vmatmul.mubr.f32.gmra.mrb[0].mxu0 %v492
    %v707 = vpop.f32.mrb[0].mxu0
    %v708 = vadd.f32 %v623, %v707
    %v709 = vpop.f32.mrb[0].mxu0
    %710 = vdwg.mxu0
    %v711 = vadd.f32 %v693, %v698
    %v712 = vadd.f32 %v711, %v703
    %v713 = vadd.f32 %v712, %v708
    %v714 = vrot.slane %v713, 4
    %v715 = vadd.f32 %v713, %v714
    %v716 = vrot.slane %v715, 2
    %v717 = vadd.f32 %v715, %v716
    %v718 = vrot.slane %v717, 1
    %v719 = vadd.f32 %v717, %v718
    %v720 = vmul.f32 %v693, %v693
    %v721 = vmul.f32 %v698, %v698
    %v722 = vmul.f32 %v703, %v703
    %v723 = vmul.f32 %v708, %v708
    %v724 = vadd.f32 %v720, %v721
    %v725 = vadd.f32 %v724, %v722
    %v726 = vadd.f32 %v725, %v723
    %v727 = vrot.slane %v726, 4
    %v728 = vadd.f32 %v726, %v727
    %v729 = vrot.slane %v728, 2
    %v730 = vadd.f32 %v728, %v729
    %v731 = vrot.slane %v730, 1
    %v732 = vadd.f32 %v730, %v731
    %v733 = vsel %vm357, %v719, %v732
    %v734 = vadd.f32 %v315, %v321
    %v735 = vadd.f32 %v734, %v327
    %v736 = vadd.f32 %v735, %v333
    %v737 = vrot.slane %v736, 4
    %v738 = vadd.f32 %v736, %v737
    %v739 = vrot.slane %v738, 2
    %v740 = vadd.f32 %v738, %v739
    %v741 = vrot.slane %v740, 1
    %v742 = vadd.f32 %v740, %v741
    %v743 = vmul.f32 %v315, %v315
    %v744 = vmul.f32 %v321, %v321
    %v745 = vmul.f32 %v327, %v327
    %v746 = vmul.f32 %v333, %v333
    %v747 = vadd.f32 %v743, %v744
    %v748 = vadd.f32 %v747, %v745
    %v749 = vadd.f32 %v748, %v746
    %v750 = vrot.slane %v749, 4
    %v751 = vadd.f32 %v749, %v750
    %v752 = vrot.slane %v751, 2
    %v753 = vadd.f32 %v751, %v752
    %v754 = vrot.slane %v753, 1
    %v755 = vadd.f32 %v753, %v754
    %v756 = vsel %vm357, %v742, %v755
    %v758 = vrot.slane %v756, 6
    %vm760 = vcmask 1041408
    %v761 = vsel %vm760, %v733, %v758
    %762 = vmatprep.subr.mxu0 0.0
    %763 = vmatpush1.msra.mxu0 %v73
    %764 = vmatprep.subr.mxu0 0.0
    %765 = vmatpush1.msra.mxu0 %v74
    %766 = vmatprep.subr.mxu0 0.0
    %767 = vmatpush1.msra.mxu0 %v75
    %768 = vmatprep.subr.mxu0 0.0
    %769 = vmatpush1.msra.mxu0 %v76
    %770 = vmatprep.subr.mxu0 0.0
    %771 = vmatpush1.msra.mxu0 %v77
    %772 = vmatprep.subr.mxu0 0.0
    %773 = vmatpush1.msra.mxu0 %v78
    %774 = vmatprep.subr.mxu0 0.0
    %775 = vmatpush1.msra.mxu0 %v79
    %776 = vmatprep.subr.mxu0 0.0
    %777 = vmatpush1.msra.mxu0 %v80
    %778 = vmatprep.subr.mxu0 0.0
    %779 = vmatpush1.msra.mxu0 %v81
    %780 = vmatprep.subr.mxu0 0.0
    %781 = vmatpush1.msra.mxu0 %v82
    %782 = vmatprep.subr.mxu0 0.0
    %783 = vmatpush1.msra.mxu0 %v83
    %784 = vmatprep.subr.mxu0 0.0
    %785 = vmatpush1.msra.mxu0 %v84
    %786 = vmatprep.subr.mxu0 0.0
    %787 = vmatpush1.msra.mxu0 %v85
    %788 = vmatprep.subr.mxu0 0.0
    %789 = vmatpush1.msra.mxu0 %v86
    %790 = vmatprep.subr.mxu0 0.0
    %791 = vmatpush1.msra.mxu0 %v87
    %792 = vmatprep.subr.mxu0 0.0
    %793 = vmatpush1.msra.mxu0 %v88
    %794 = vmatprep.subr.mxu0 0.0
    %795 = vmatpush1.msra.mxu0 0.0
    %796 = vmatprep.subr.mxu0 0.0
    %797 = vmatpush1.msra.mxu0 0.0
    %798 = vmatprep.subr.mxu0 0.0
    %799 = vmatpush1.msra.mxu0 0.0
    %800 = vmatprep.subr.mxu0 0.0
    %801 = vmatpush1.msra.mxu0 0.0
    %802 = vmatprep.subr.mxu0 0.0
    %803 = vmatpush1.msra.mxu0 0.0
    %804 = vmatprep.subr.mxu0 0.0
    %805 = vmatpush1.msra.mxu0 0.0
    %806 = vmatprep.subr.mxu0 0.0
    %807 = vmatpush1.msra.mxu0 0.0
    %808 = vmatprep.subr.mxu0 0.0
    %809 = vmatpush1.msra.mxu0 0.0
    %810 = vmatprep.subr.mxu0 0.0
    %811 = vmatpush1.msra.mxu0 0.0
    %812 = vmatprep.subr.mxu0 0.0
    %813 = vmatpush1.msra.mxu0 0.0
    %814 = vmatprep.subr.mxu0 0.0
    %815 = vmatpush1.msra.mxu0 0.0
    %816 = vmatprep.subr.mxu0 0.0
    %817 = vmatpush1.msra.mxu0 0.0
    %818 = vmatprep.subr.mxu0 0.0
    %819 = vmatpush1.msra.mxu0 0.0
    %820 = vmatprep.subr.mxu0 0.0
    %821 = vmatpush1.msra.mxu0 0.0
    %822 = vmatprep.subr.mxu0 0.0
    %823 = vmatpush1.msra.mxu0 0.0
    %824 = vmatprep.subr.mxu0 0.0
    %825 = vmatpush1.msra.mxu0 0.0
    %826 = vmatprep.mubr.f32.mxu0 0.0
    %827 = vmatmul.mubr.f32.gmra.mrb[0].mxu0 %v761
    %v828 = vpop.f32.mrb[0].mxu0
    %v829 = vadd.f32 0.0, %v828
    %v830 = vpop.f32.mrb[0].mxu0
    %831 = vdwg.mxu0
    %v832 = vmul.f32 %v829, 0.001953125
    %v833 = vmul.f32 %v832, %v832
    %v835 = vrot.slane %v833, 7
    %v837 = vsub.f32 %v832, %v835
    %v838 = vadd.f32 %v837, 1e-05
    %v839 = vrsqrt.pop %v838
    %v840 = vrot.slane %v89, 1
    %v842 = vmul.f32 %v839, %v840
    %v843 = vlaneseq
    %v844 = vshrl.u32 %v843, 7
    %v845 = vsub.s32 1, %v844
    %v846 = vrot.slane %v842, %v845
    %v847 = vmul.f32 %v693, %v846
    %v848 = vmul.f32 %v698, %v846
    %v849 = vmul.f32 %v703, %v846
    %v850 = vmul.f32 %v708, %v846
    %v852 = vrot.slane %v842, 1
    %v854 = vmul.f32 %v832, %v852
    %v856 = vrot.slane %v854, 5
    %v858 = vsub.f32 %v89, %v856
    %v859 = vlaneseq
    %v860 = vshrl.u32 %v859, 7
    %v861 = vsub.s32 3, %v860
    %v862 = vrot.slane %v858, %v861
    %v863 = vadd.f32 %v847, %v862
    %v864 = vadd.f32 %v848, %v862
    %v865 = vadd.f32 %v849, %v862
    %v866 = vadd.f32 %v850, %v862
    %v867 = vlaneseq
    %v868 = vshrl.u32 %v867, 7
    %v869 = vsub.s32 3, %v868
    %v870 = vrot.slane %v842, %v869
    %v871 = vmul.f32 %v315, %v870
    %v872 = vmul.f32 %v321, %v870
    %v873 = vmul.f32 %v327, %v870
    %v874 = vmul.f32 %v333, %v870
    %v875 = vlaneseq
    %v876 = vshrl.u32 %v875, 7
    %v877 = vsub.s32 5, %v876
    %v878 = vrot.slane %v858, %v877
    %v879 = vadd.f32 %v871, %v878
    %v880 = vadd.f32 %v872, %v878
    %v881 = vadd.f32 %v873, %v878
    %v882 = vadd.f32 %v874, %v878
    %v883 = vadd.f32 %v863, %v879
    %v884 = vadd.f32 %v864, %v880
    %v885 = vadd.f32 %v865, %v881
    %v886 = vadd.f32 %v866, %v882
    %v887 = vmax.f32 %v883, 0.0
    %v888 = vmax.f32 %v884, 0.0
    %v889 = vmax.f32 %v885, 0.0
    %v890 = vmax.f32 %v886, 0.0
    %891 = vst [vmem:[#allocation10] sm:$0xff] %v887
    %892 = vst [vmem:[#allocation10 + $0x8] sm:$0xff] %v888
    %893 = vst [vmem:[#allocation10 + $0x10] sm:$0xff] %v889
    %894 = vst [vmem:[#allocation10 + $0x18] sm:$0xff] %v890
    // Predicated region
    $region34: #{tpu_custom_call.1} parent=1 // pred_check
      _
    $region35: #{tpu_custom_call.1} parent=1 // pred_check_branch
      %896 = sbr.rel (0) target = $region37
    $region36: #{tpu_custom_call.1} parent=1 // pred_region
      %s898 = ssub.s32 512, 512
      %899 = vsyncadd [#allocation4], %s898
      %s900 = sshll.u32 [#allocation10], 4
      %s901 = int_to_ptr.vmem [resolvable:$true] %s900
      %906 = dma.vmem_to_hbm [thread:$0]  %s901, 512, %s4, [#allocation4], 128, 128, 8
    $region37: #{tpu_custom_call.1} parent=1 // pred_fallthru
      _
    // Predicated region
    $region38: #{tpu_custom_call.1} parent=1 // pred_check
      _
    $region39: #{tpu_custom_call.1} parent=1 // pred_check_branch
      %908 = sbr.rel (0) target = $region41
    $region40: #{tpu_custom_call.1} parent=1 // pred_region
      %909 = dma.done [#allocation4], 512
    $region41: #{tpu_custom_call.1} parent=1 // pred_fallthru
      _
    %910 = vsyncpa [#allocation3], 1
    %911 = vsyncpa [#allocation6], 1
    %912 = vsyncpa [#allocation9], 1
    %913 = vsyncpa [#allocation4], 1

</llo_original>
